<compile_context>
chip_gen: v5e
topology: v5e:2x2
jax: 0.10.0
libtpu: 0.0.40
codegen_flags: <defaults>
</compile_context>

<pallas_src>
import functools

import jax
import jax.numpy as jnp
from jax.experimental import pallas as pl
from jax.experimental.pallas import tpu as pltpu


def _pool_ceil_kernel(x_ref, cp_ref, rp_ref, out_ref, *, patch):
    # x_ref  : (Bt, H, W)   mask block, native dtype
    # cp_ref : (W, Wp)      0/1 column-pooling matrix (MXU operand dtype)
    # rp_ref : (Hp, H)      0/1 row-pooling matrix (f32, tiny)
    # out_ref: (Bt, Hp, Wp)
    Bt, H, W = x_ref.shape
    Wp = cp_ref.shape[1]
    Hp = rp_ref.shape[0]

    # Column pooling: the only full-size matmul.  bf16 x bf16 on the MXU
    # (exact for 0/1 masks; cp_ref.dtype selects the precision path),
    # f32 accumulation.  No reshapes of the input tile.
    xb = x_ref[...].astype(cp_ref.dtype)
    y = jax.lax.dot_general(
        xb, cp_ref[...],
        dimension_numbers=(((2,), (0,)), ((), ())),
        preferred_element_type=jnp.float32)                      # (Bt, H, Wp)

    # Row pooling on the small intermediate y: hoisted (Hp, H) matrix applied
    # per image as a batched matmul (replaces the old block-diagonal
    # (Bt*Hp, Bt*H) matrix and its per-step iota/where build).
    # MACs ~ Hp*Wp/W per input element -> negligible vs. the column matmul.
    rp_b = jnp.broadcast_to(rp_ref[...][None, :, :], (Bt, Hp, H))
    pooled = jax.lax.dot_general(
        rp_b, y,
        dimension_numbers=(((2,), (1,)), ((0,), (0,))),
        preferred_element_type=jnp.float32)                      # (Bt, Hp, Wp)

    # Single exact division by p*p before ceil (division is correctly rounded:
    # a fully-covered patch gives exactly 1.0 even for non-power-of-two p;
    # a reciprocal-multiply could round just above 1.0 and ceil to 2).
    mean = pooled / jnp.float32(patch * patch)
    out_ref[...] = jnp.ceil(mean).astype(out_ref.dtype)


def _make_pool_matrix(n_in, n_out, patch):
    # (n_in, n_out) f32, value 1 where input index j belongs to output block i.
    cols = jnp.arange(n_in)[:, None]
    rows = jnp.arange(n_out)[None, :]
    return jnp.where(cols // patch == rows, 1.0, 0.0).astype(jnp.float32)


def _choose_bt(B, H, W, itemsize):
    """Batch-tile size: largest divisor of B within the VMEM input budget.

    Budget ~8 MiB per input buffer (double-buffered -> ~16 MiB), which with the
    bf16 in-kernel copy and the small y/output buffers stays well under the
    48 MiB vmem_limit_bytes (and under v7x's 64 MiB physical VMEM).
    Prefers an even grid of >= 2 steps so the "parallel" batch axis shards
    across both TensorCores on v7x.
    """
    per_img = max(1, H * W * itemsize)
    cap = min(B, max(1, (8 << 20) // per_img))
    if B == 1:
        return 1
    divisors = [d for d in range(1, cap + 1) if B % d == 0]
    even_steps = [d for d in divisors if B // d >= 2 and (B // d) % 2 == 0]
    two_steps = [d for d in divisors if B // d >= 2]
    if even_steps:
        return max(even_steps)
    if two_steps:
        return max(two_steps)
    return 1


class ImageMaskLearnerPallas:
    """JAX/Pallas port of ImageMaskLearner."""

    def __init__(self, input_resolution, patch_size, width, dtype=jnp.float32,
                 mask_emb_depth=1, assume_binary_mask=True, key=None):
        if key is None:
            key = jax.random.PRNGKey(0)
        self.dtype = dtype
        self.input_resolution = input_resolution
        self.patch_size = patch_size
        self.width = width
        self.mask_prompt_depth = mask_emb_depth
        self.assume_binary_mask = assume_binary_mask
        n_side = input_resolution // patch_size
        n_tok = n_side * n_side
        # nn.init.normal_(std=0.02) followed by *= 10  -> std 0.2 (deterministic)
        self.mask_embedding = (
            jax.random.normal(key, (mask_emb_depth, n_tok, width), dtype=jnp.float32)
            * 0.02 * 10.0
        ).astype(dtype)
        # Hoisted constants, built once (no per-call / per-step construction):
        # column pool (W, Wp) and row pool (Hp, H) = transpose (square input).
        self._col_pool_f32 = _make_pool_matrix(input_resolution, n_side, patch_size)
        self._col_pool_bf16 = self._col_pool_f32.astype(jnp.bfloat16)
        self._row_pool_f32 = jnp.transpose(self._col_pool_f32)      # (Hp, H)

    def __call__(self, mask):
        # mask: (B, 1, H, W)  -- NCHW like the PyTorch module
        B, C, H, W = mask.shape
        assert C == 1 and H == self.input_resolution and W == self.input_resolution
        p = self.patch_size
        assert H % p == 0 and W % p == 0
        Hp, Wp = H // p, W // p
        L = Hp * Wp

        # Keep the mask in its native dtype in HBM (no wrapper-side cast pass);
        # the kernel casts the loaded tile to the MXU operand dtype.
        x = jnp.squeeze(mask, axis=1)                               # (B, H, W)
        if x.dtype == jnp.bool_:
            x = x.astype(jnp.int8)   # 1-byte HBM reads; bool refs are awkward

        # MXU operand dtype: bf16 is exact for 0/1 masks (and any integer mask);
        # keep the native float dtype for soft masks when assume_binary_mask=False.
        if self.assume_binary_mask or jnp.issubdtype(x.dtype, jnp.integer):
            mxu_dtype = jnp.bfloat16
        elif jnp.issubdtype(x.dtype, jnp.floating):
            mxu_dtype = x.dtype
        else:
            mxu_dtype = jnp.float32
        if mxu_dtype == jnp.bfloat16:
            cp = self._col_pool_bf16
        elif mxu_dtype == jnp.float32:
            cp = self._col_pool_f32
        else:
            cp = self._col_pool_f32.astype(mxu_dtype)   # rare path; tiny array

        Bt = _choose_bt(B, H, W, jnp.dtype(x.dtype).itemsize)
        grid = (B // Bt,)

        pooled = pl.pallas_call(
            functools.partial(_pool_ceil_kernel, patch=p),
            out_shape=jax.ShapeDtypeStruct((B, Hp, Wp), self.dtype),
            grid_spec=pltpu.PrefetchScalarGridSpec(
                num_scalar_prefetch=0,
                grid=grid,
                in_specs=[
                    pl.BlockSpec((Bt, H, W), lambda b: (b, 0, 0)),
                    pl.BlockSpec((W, Wp), lambda b: (0, 0)),
                    pl.BlockSpec((Hp, H), lambda b: (0, 0)),
                ],
                out_specs=pl.BlockSpec((Bt, Hp, Wp), lambda b: (b, 0, 0)),
            ),
            compiler_params=pltpu.CompilerParams(
                dimension_semantics=("parallel",),
                vmem_limit_bytes=48 * 1024 * 1024),
        )(x, cp, self._row_pool_f32)

        mask_out = pooled.reshape(B, L, 1)                          # free reshape

        # Parameter plumbing (no compute): replicate if the token dim is 1.
        if self.mask_embedding.shape[1] == 1:
            mask_embedding = jnp.tile(self.mask_embedding, (1, L, 1))
        else:
            mask_embedding = self.mask_embedding
        return mask_out, mask_embedding.astype(self.dtype)


def _reference_forward(mask, mask_embedding, patch_size, dtype):
    """Pure-JAX reference mirroring the PyTorch forward."""
    B, _, H, W = mask.shape
    p = patch_size
    x = jnp.squeeze(mask, axis=1).astype(jnp.float32)
    x = x.reshape(B, H // p, p, W // p, p)
    pooled = x.mean(axis=(2, 4)).reshape(B, -1)[..., None]
    pooled = jnp.ceil(pooled).astype(dtype)
    L = pooled.shape[1]
    emb = (jnp.tile(mask_embedding, (1, L, 1))
           if mask_embedding.shape[1] == 1 else mask_embedding)
    return pooled, emb.astype(dtype)


def _run_case(B, H, patch, width, depth, mask_dtype, out_dtype, key):
    k_mask, k_emb = jax.random.split(key)
    mask = (jax.random.uniform(k_mask, (B, 1, H, H)) > 0.7).astype(mask_dtype)
    learner = ImageMaskLearnerPallas(
        input_resolution=H, patch_size=patch, width=width,
        dtype=out_dtype, mask_emb_depth=depth, key=k_emb)
    mask_out, emb_out = learner(mask)
    jax.block_until_ready(mask_out)
    jax.block_until_ready(emb_out)
    ref_mask, ref_emb = _reference_forward(mask, learner.mask_embedding, patch,
                                           out_dtype)
    L = (H // patch) ** 2
    assert mask_out.shape == (B, L, 1)
    assert emb_out.shape == (depth, L, width)
    assert jnp.allclose(mask_out.astype(jnp.float32),
                        ref_mask.astype(jnp.float32), atol=1e-6)
    assert jnp.allclose(emb_out.astype(jnp.float32),
                        ref_emb.astype(jnp.float32))


if __name__ == "__main__":
    key = jax.random.PRNGKey(0)
    k0, k1 = jax.random.split(key)

    # Primary case (matches the module at small shapes): input_resolution=16,
    # patch=4, width=32, depth=1, batch=2 -> mask (2, 1, 16, 16), L = 16.
    _run_case(B=2, H=16, patch=4, width=32, depth=1,
              mask_dtype=jnp.float32, out_dtype=jnp.float32, key=k0)

    # Secondary case: narrow (bf16) mask from HBM, odd batch, different patch.
    _run_case(B=3, H=32, patch=8, width=16, depth=1,
              mask_dtype=jnp.bfloat16, out_dtype=jnp.bfloat16, key=k1)

    print("KERNEL_OK")
</pallas_src>

<mosaic_0001>
module attributes {stable_mosaic.version = 11 : i64} {
  func.func @_pool_ceil_kernel(%arg0: i32, %arg1: memref<1x16x16xf32, #tpu.memory_space<vmem>>, %arg2: memref<16x4xbf16, #tpu.memory_space<vmem>>, %arg3: memref<4x16xf32, #tpu.memory_space<vmem>>, %arg4: memref<1x4x4xf32, #tpu.memory_space<vmem>>) attributes {dimension_semantics = [#tpu.dimension_semantics<parallel>], iteration_bounds = array<i64: 2>, scalar_prefetch = 0 : i64, scratch_operands = 0 : i64, tpu.core_type = #tpu.core_type<tc>, window_params = [{transform_indices = @transform_0, window_bounds = array<i64: 1, 16, 16>}, {pipeline_mode = #tpu.pipeline_mode<synchronous>, transform_indices = @transform_1, window_bounds = array<i64: 16, 4>}, {pipeline_mode = #tpu.pipeline_mode<synchronous>, transform_indices = @transform_2, window_bounds = array<i64: 4, 16>}, {transform_indices = @transform_3, window_bounds = array<i64: 1, 4, 4>}]} {
    %c0 = arith.constant 0 : index
    %c0_0 = arith.constant 0 : index
    %c0_1 = arith.constant 0 : index
    %0 = vector.load %arg1[%c0, %c0_0, %c0_1] : memref<1x16x16xf32, #tpu.memory_space<vmem>>, vector<1x16x16xf32>
    %1 = arith.truncf %0 : vector<1x16x16xf32> to vector<1x16x16xbf16>
    %c0_2 = arith.constant 0 : index
    %c0_3 = arith.constant 0 : index
    %2 = vector.load %arg2[%c0_2, %c0_3] : memref<16x4xbf16, #tpu.memory_space<vmem>>, vector<16x4xbf16>
    %cst = arith.constant dense<0.000000e+00> : vector<1x16x4xf32>
    %3 = tpu.matmul %1, %2, %cst {dimension_numbers = #tpu.dot_dimension_numbers<[2], [0], [0, 1], [1], [0, 0, 0, 1, 1, 1], [], []>} : vector<1x16x16xbf16>, vector<16x4xbf16>, vector<1x16x4xf32> -> vector<1x16x4xf32>
    %c0_4 = arith.constant 0 : index
    %c0_5 = arith.constant 0 : index
    %4 = vector.load %arg3[%c0_4, %c0_5] : memref<4x16xf32, #tpu.memory_space<vmem>>, vector<4x16xf32>
    %5 = vector.shape_cast %4 : vector<4x16xf32> to vector<1x4x16xf32>
    %cst_6 = arith.constant dense<0.000000e+00> : vector<1x4x4xf32>
    %6 = tpu.matmul %5, %3, %cst_6 {dimension_numbers = #tpu.dot_dimension_numbers<[2], [1], [1], [2], [0, 0, 0, 1, 1, 2], [0], [0]>} : vector<1x4x16xf32>, vector<1x16x4xf32>, vector<1x4x4xf32> -> vector<1x4x4xf32>
    %cst_7 = arith.constant 1.600000e+01 : f32
    %7 = vector.broadcast %cst_7 : f32 to vector<1x4x4xf32>
    %8 = arith.divf %6, %7 : vector<1x4x4xf32>
    %9 = math.ceil %8 : vector<1x4x4xf32>
    %c0_8 = arith.constant 0 : index
    %c0_9 = arith.constant 0 : index
    %c0_10 = arith.constant 0 : index
    %10 = vector.load %arg4[%c0_8, %c0_9, %c0_10] : memref<1x4x4xf32, #tpu.memory_space<vmem>>, vector<1x4x4xf32>
    tpu.vector_store %arg4[%c0_8, %c0_9, %c0_10], %9 {strides = array<i32>} : memref<1x4x4xf32, #tpu.memory_space<vmem>>, vector<1x4x4xf32>,
    return
  }
  func.func @transform_0(%arg0: i32) -> (i32, i32, i32) {
    %c0_i32 = arith.constant 0 : i32
    %c0_i32_0 = arith.constant 0 : i32
    %c0_i32_1 = arith.constant 0 : i32
    return %arg0, %c0_i32, %c0_i32_0 : i32, i32, i32
  }
  func.func @transform_1(%arg0: i32) -> (i32, i32) {
    %c0_i32 = arith.constant 0 : i32
    %c0_i32_0 = arith.constant 0 : i32
    %c0_i32_1 = arith.constant 0 : i32
    return %c0_i32, %c0_i32_0 : i32, i32
  }
  func.func @transform_2(%arg0: i32) -> (i32, i32) {
    %c0_i32 = arith.constant 0 : i32
    %c0_i32_0 = arith.constant 0 : i32
    %c0_i32_1 = arith.constant 0 : i32
    return %c0_i32, %c0_i32_0 : i32, i32
  }
  func.func @transform_3(%arg0: i32) -> (i32, i32, i32) {
    %c0_i32 = arith.constant 0 : i32
    %c0_i32_0 = arith.constant 0 : i32
    %c0_i32_1 = arith.constant 0 : i32
    return %arg0, %c0_i32, %c0_i32_0 : i32, i32, i32
  }
}

</mosaic_0001>

<llo_original>
// kernel: tpu_custom_call.1
$region0: #{tpu_custom_call.1}
  #allocation0 [shape = 'u32[]', space=smem, size = 0x4, offset = 0x4, fixed_abs, tag = 'smem constant byte address 0x4 - core index']
  #allocation1 [shape = 'u32[72,128]{1,0:T(1,128)}', space=vmem, size = 0x9000, scoped, tag = 'internal scratch']
  %s0 = inlined_call_operand.hbm [shape: f32[2,16,16], index: 0, kind: input, shape index: {}]
  %s1 = inlined_call_operand.vmem [shape: bf16[16,4], index: 1, kind: input, shape index: {}]
  %s2 = inlined_call_operand.vmem [shape: f32[4,16], index: 2, kind: input, shape index: {}]
  %s3 = inlined_call_operand.hbm [shape: f32[2,4,4], index: 3, kind: output, shape index: {}]
  %s4 = sld [smem:[#allocation0]]
  $region49: #{tpu_custom_call.1} parent=0
    _
  %s6 = ssub.s32 1, %s4
  %s7 = scalar_select 0, %s6, %s4
  $region1: #{tpu_custom_call.1} parent=0
    #allocation2 [shape = 'u8[16384]{0}', space=vmem, size = 0x4000, scoped, tag = 'input window, operand 0']
    #allocation3 [shape = 's32[2]{0}', space=sflag, size = 0x8, scoped, tag = 'scoped memory for tpu_custom_call.1']
    #allocation4 [shape = 's32[2]{0}', space=sflag, size = 0x8, scoped, tag = 'scoped memory for tpu_custom_call.1']
    #allocation5 [shape = 'u8[4096]{0}', space=vmem, size = 0x1000, scoped, tag = 'output window, operand 0']
    %8 = vsyncpa [#allocation3], 0
    %s9 = scalar_lea.sflag [#allocation3], 1
    %10 = vsyncpa %s9, 0
    %11 = vsyncpa [#allocation4], 0
    %s12 = scalar_lea.sflag [#allocation4], 1
    %13 = vsyncpa %s12, 0
    loop: start=0, step=1, limit=4
    $region2: #{tpu_custom_call.1} parent=1 // loop_pre_header
      _
    $region3: #{tpu_custom_call.1} parent=1 // loop_header
      %s15 = sphi 0, %s19
      %p16 = scmp.ge.s32.totalorder %s15, 4
      %s25 = sphi 0, %s27
      %s28 = sphi 0, %s25
      %s29 = sphi 0, %s28
      %s45 = sphi 0, %s29
      %s49 = sphi 0, %s49
      %s51 = sphi 0, %s49
      %s52 = sphi 0, %s51
      %s66 = sphi 0, %s52
      %s70 = sphi 0, %s70
      %s72 = sphi 0, %s70
      %s73 = sphi 0, %s72
      %s87 = sphi 0, %s73
      %s93 = sphi 0, %s95
      %s96 = sphi 0, %s93
      %s97 = sphi 0, %s96
      %s113 = sphi 0, %s97
    $region4: #{tpu_custom_call.1} parent=1 // loop_header_branch
      %18 = sbr.rel (%p16) target = $region8
    $region5: #{tpu_custom_call.1} parent=1 // loop_body
      %s20 = ssub.s32 %s15, 1
      %s21 = ssub.s32 %s15, 2
      %s22 = sadd.s32 %s15, 1
      %s23 = ssub.s32 %s15, %s22
      %p24 = scmp.eq.s32.totalorder %s23, 0
      %s26 = sadd.s32 %s25, 1
      %s27 = scalar_select %p24, %s25, %s26
      %p30 = pneg %p24
      %p31 = scmp.eq.s32.totalorder %s15, 1
      %p32 = por %p30, %p31
      %p33 = scmp.ne.s32.totalorder %s25, %s28
      %p34 = scmp.eq.s32.totalorder %s15, 0
      %p35 = por %p33, %p34
      %p36 = scmp.ne.s32.totalorder %s25, %s28
      %p37 = scmp.eq.s32.totalorder %s20, 1
      %p38 = por %p36, %p37
      %p39 = scmp.ne.s32.totalorder %s28, %s29
      %p40 = scmp.eq.s32.totalorder %s20, 0
      %p41 = por %p39, %p40
      %p42 = scmp.ne.s32.totalorder %s28, %s29
      %p43 = scmp.eq.s32.totalorder %s21, 1
      %p44 = por %p42, %p43
      %p46 = scmp.ne.s32.totalorder %s29, %s45
      %p47 = scmp.eq.s32.totalorder %s21, 0
      %p48 = por %p46, %p47
      %s50 = sadd.s32 %s49, 1
      %p53 = scmp.eq.s32.totalorder %s15, 1
      %p54 = scmp.ne.s32.totalorder %s49, %s51
      %p55 = scmp.eq.s32.totalorder %s15, 0
      %p56 = por %p54, %p55
      %p57 = scmp.ne.s32.totalorder %s49, %s51
      %p58 = scmp.eq.s32.totalorder %s20, 1
      %p59 = por %p57, %p58
      %p60 = scmp.ne.s32.totalorder %s51, %s52
      %p61 = scmp.eq.s32.totalorder %s20, 0
      %p62 = por %p60, %p61
      %p63 = scmp.ne.s32.totalorder %s51, %s52
      %p64 = scmp.eq.s32.totalorder %s21, 1
      %p65 = por %p63, %p64
      %p67 = scmp.ne.s32.totalorder %s52, %s66
      %p68 = scmp.eq.s32.totalorder %s21, 0
      %p69 = por %p67, %p68
      %s71 = sadd.s32 %s70, 1
      %p74 = scmp.eq.s32.totalorder %s15, 1
      %p75 = scmp.ne.s32.totalorder %s70, %s72
      %p76 = scmp.eq.s32.totalorder %s15, 0
      %p77 = por %p75, %p76
      %p78 = scmp.ne.s32.totalorder %s70, %s72
      %p79 = scmp.eq.s32.totalorder %s20, 1
      %p80 = por %p78, %p79
      %p81 = scmp.ne.s32.totalorder %s72, %s73
      %p82 = scmp.eq.s32.totalorder %s20, 0
      %p83 = por %p81, %p82
      %p84 = scmp.ne.s32.totalorder %s72, %s73
      %p85 = scmp.eq.s32.totalorder %s21, 1
      %p86 = por %p84, %p85
      %p88 = scmp.ne.s32.totalorder %s73, %s87
      %p89 = scmp.eq.s32.totalorder %s21, 0
      %p90 = por %p88, %p89
      %s91 = ssub.s32 %s15, %s22
      %p92 = scmp.eq.s32.totalorder %s91, 0
      %s94 = sadd.s32 %s93, 1
      %s95 = scalar_select %p92, %s93, %s94
      %p98 = pneg %p92
      %p99 = scmp.eq.s32.totalorder %s15, 1
      %p100 = por %p98, %p99
      %p101 = scmp.ne.s32.totalorder %s93, %s96
      %p102 = scmp.eq.s32.totalorder %s15, 0
      %p103 = por %p101, %p102
      %p104 = scmp.ne.s32.totalorder %s93, %s96
      %p105 = scmp.eq.s32.totalorder %s20, 1
      %p106 = por %p104, %p105
      %p107 = scmp.ne.s32.totalorder %s96, %s97
      %p108 = scmp.eq.s32.totalorder %s20, 0
      %p109 = por %p107, %p108
      %p110 = scmp.ne.s32.totalorder %s96, %s97
      %p111 = scmp.eq.s32.totalorder %s21, 1
      %p112 = por %p110, %p111
      %p114 = scmp.ne.s32.totalorder %s97, %s113
      %p115 = scmp.eq.s32.totalorder %s21, 0
      %p116 = por %p114, %p115
      %p117 = scmp.le.s32.totalorder 1, %s15
      %p118 = scmp.lt.s32.totalorder %s15, 3
      %p119 = pnand %p117, %p118
      %p120 = pneg %p119
      // Predicated region
      $region9: #{tpu_custom_call.1} parent=5 // pred_check
        _
      $region10: #{tpu_custom_call.1} parent=5 // pred_check_branch
        %122 = sbr.rel (%p119) target = $region12
      $region11: #{tpu_custom_call.1} parent=5 // pred_region
        %s123 = ssub.s32 %s15, 1
        // Predicated region
        $region13: #{tpu_custom_call.1} parent=11 // pred_check
          %p124 = pneg %p62
        $region14: #{tpu_custom_call.1} parent=11 // pred_check_branch
          %126 = sbr.rel (%p124) target = $region16
        $region15: #{tpu_custom_call.1} parent=11 // pred_region
          _
        $region16: #{tpu_custom_call.1} parent=11 // pred_fallthru
          _
        // Predicated region
        $region17: #{tpu_custom_call.1} parent=11 // pred_check
          %p127 = pneg %p83
        $region18: #{tpu_custom_call.1} parent=11 // pred_check_branch
          %129 = sbr.rel (%p127) target = $region20
        $region19: #{tpu_custom_call.1} parent=11 // pred_region
          _
        $region20: #{tpu_custom_call.1} parent=11 // pred_fallthru
          _
      $region12: #{tpu_custom_call.1} parent=5 // pred_fallthru
        _
      %p130 = scmp.lt.s32.totalorder %s15, 2
      // Predicated region
      $region21: #{tpu_custom_call.1} parent=5 // pred_check
        %p131 = pneg %p130
      $region22: #{tpu_custom_call.1} parent=5 // pred_check_branch
        %133 = sbr.rel (%p131) target = $region24
      $region23: #{tpu_custom_call.1} parent=5 // pred_region
        // Predicated region
        $region25: #{tpu_custom_call.1} parent=23 // pred_check
          %p134 = pneg %p35
        $region26: #{tpu_custom_call.1} parent=23 // pred_check_branch
          %136 = sbr.rel (%p134) target = $region28
        $region27: #{tpu_custom_call.1} parent=23 // pred_region
          %s137 = sand.u32 %s25, 1
          %s138 = scalar_lea.sflag [#allocation3], %s137
          %s139 = sand.u32 %s25, 1
          %s140 = smul.addr %s139, 16
          %s141 = scalar_lea.vmem [#allocation2], %s140
          %143 = vsyncadd %s138, 0
          %s144 = smul.addr %s15, 2
          %s145 = smul.addr %s144, 8
          %s146 = scalar_lea.hbm %s0, %s145
          %s147 = sshll.u32 %s146, 4
          %s148 = int_to_ptr.hbm [resolvable:$true] %s147
          %s149 = sshll.u32 %s141, 4
          %s150 = int_to_ptr.vmem [resolvable:$true] %s149
          %155 = dma.hbm_to_vmem [thread:$0]  %s148, 256, %s150, %s138, 128, 128, 8
        $region28: #{tpu_custom_call.1} parent=23 // pred_fallthru
          _
      $region24: #{tpu_custom_call.1} parent=5 // pred_fallthru
        _
      %p156 = scmp.le.s32.totalorder 1, %s15
      %p157 = scmp.lt.s32.totalorder %s15, 3
      %p158 = pnand %p156, %p157
      %p159 = pneg %p158
      // Predicated region
      $region29: #{tpu_custom_call.1} parent=5 // pred_check
        _
      $region30: #{tpu_custom_call.1} parent=5 // pred_check_branch
        %161 = sbr.rel (%p158) target = $region32
      $region31: #{tpu_custom_call.1} parent=5 // pred_region
        %s162 = ssub.s32 %s15, 1
        %s163 = sand.u32 %s28, 1
        %s164 = scalar_lea.sflag [#allocation3], %s163
        %s165 = sand.u32 %s28, 1
        %s166 = smul.addr %s165, 16
        %s167 = scalar_lea.vmem [#allocation2], %s166
        // Predicated region
        $region33: #{tpu_custom_call.1} parent=31 // pred_check
          %p168 = pneg %p41
        $region34: #{tpu_custom_call.1} parent=31 // pred_check_branch
          %170 = sbr.rel (%p168) target = $region36
        $region35: #{tpu_custom_call.1} parent=31 // pred_region
          %172 = dma.done %s164, 256
        $region36: #{tpu_custom_call.1} parent=31 // pred_fallthru
          _
        %s173 = sand.u32 %s28, 1
        %s174 = scalar_lea.sflag [#allocation3], %s173
        %s175 = sand.u32 %s28, 1
        %s176 = smul.addr %s175, 16
        %s177 = scalar_lea.vmem [#allocation2], %s176
        %p178 = pneg %p41
        %p179 = pneg %p38
        %p180 = pneg %p62
        %p181 = pneg %p59
        %p182 = pneg %p83
        %p183 = pneg %p80
        %p184 = pneg %p109
        %p185 = pneg %p106
        %s186 = sand.u32 %s96, 1
        %s187 = scalar_lea.sflag [#allocation4], %s186
        %s188 = sand.u32 %s96, 1
        %s189 = smul.addr %s188, 4
        %s190 = scalar_lea.vmem [#allocation5], %s189
        %v192 = vld [vmem:[%s167] sm:$0xff]
        %v193 = vld [vmem:[%s167 + $0x8] sm:$0xff]
        %v194 = vpack.c.bf16 %v192, %v192
        %v195 = vpack.c.bf16 %v193, %v193
        %v196 = vld [vmem:[%s1] sm:$0xf]
        %v197 = vld [vmem:[%s1 + $0x4] sm:$0xf]
        %v200 = vunpack.c.l.b16 %v194
        %v201 = vunpack.c.l.b16 %v195
        %v202 = vpack.c.b16 %v201, %v200
        %v205 = vunpack.c.l.b16 %v196
        %v206 = vunpack.c.l.b16 %v197
        %v207 = vpack.c.b16 %v206, %v205
        %vm209 = vcmask 130048
        %v211 = vsel %vm209, %v202, 0
        %213 = vmatpush.bf16.msra.mxu0 0
        %214 = vmatpush.bf16.msra.mxu0 0
        %215 = vmatpush.bf16.msra.mxu0 0
        %216 = vmatpush.bf16.msra.mxu0 0
        %217 = vmatpush.bf16.msra.mxu0 0
        %218 = vmatpush.bf16.msra.mxu0 0
        %219 = vmatpush.bf16.msra.mxu0 0
        %220 = vmatpush.bf16.msra.mxu0 %v207
        %221 = vmatmul.bf16.gmra.mxu0 %v211
        %v222 = vpop.f32.mrf.mxu0
        %v223 = vadd.f32 0.0, %v222
        %v224 = vpop.f32.mrf.mxu0
        %v225 = vadd.f32 0.0, %v224
        %226 = vdwg.mxu0
        %v227 = vld [vmem:[%s2] sm:$0xf]
        %v229 = vsel %vm209, %v227, 0
        %231 = vmatpush.msra.mxu0 0.0
        %232 = vmatpush.msra.mxu0 0.0
        %233 = vmatpush.msra.mxu0 0.0
        %234 = vmatpush.msra.mxu0 0.0
        %235 = vmatpush.msra.mxu0 0.0
        %236 = vmatpush.msra.mxu0 0.0
        %237 = vmatpush.msra.mxu0 0.0
        %238 = vmatpush.msra.mxu0 0.0
        %239 = vmatpush.msra.mxu0 0.0
        %240 = vmatpush.msra.mxu0 0.0
        %241 = vmatpush.msra.mxu0 0.0
        %242 = vmatpush.msra.mxu0 0.0
        %243 = vmatpush.msra.mxu0 0.0
        %244 = vmatpush.msra.mxu0 0.0
        %245 = vmatpush.msra.mxu0 %v225
        %246 = vmatpush.msra.mxu0 %v223
        %247 = vmatmul.f32.gmra.mxu0 %v229
        %v248 = vpop.f32.mrf.mxu0
        %v249 = vadd.f32 0.0, %v248
        %250 = vdwg.mxu0
        %v251 = vrcp.pop 16.0
        %v252 = vmul.f32 16.0, %v251
        %v253 = vsub.f32 1.0, %v252
        %v254 = vmul.f32 %v251, %v253
        %v255 = vadd.f32 %v251, %v254
        %vm256 = vweird.f32 %v251
        %v257 = vsel %vm256, %v251, %v255
        %v258 = vmul.f32 %v249, %v257
        %v259 = vceil.f32 %v258
        %vm260 = vcmask 27648
        %261 = vst.msk [vmem:[%s190] sm:$0xf] %vm260, %v259
        %s262 = sand.u32 %s96, 1
        %s263 = scalar_lea.sflag [#allocation4], %s262
        %s264 = sand.u32 %s96, 1
        %s265 = smul.addr %s264, 4
        %s266 = scalar_lea.vmem [#allocation5], %s265
        // Predicated region
        $region37: #{tpu_custom_call.1} parent=31 // pred_check
          %p267 = pneg %p106
        $region38: #{tpu_custom_call.1} parent=31 // pred_check_branch
          %269 = sbr.rel (%p267) target = $region40
        $region39: #{tpu_custom_call.1} parent=31 // pred_region
          %271 = vsyncadd %s263, 0
          %s272 = smul.addr %s20, 4
          %s273 = scalar_lea.hbm %s3, %s272
          %s275 = sshll.u32 %s266, 4
          %s276 = int_to_ptr.vmem [resolvable:$true] %s275
          %s277 = sshll.u32 %s273, 4
          %s278 = int_to_ptr.hbm [resolvable:$true] %s277
          %280 = dma.vmem_to_hbm [thread:$0]  %s276, 64, %s278, %s263
        $region40: #{tpu_custom_call.1} parent=31 // pred_fallthru
          _
      $region32: #{tpu_custom_call.1} parent=5 // pred_fallthru
        _
      %p281 = scmp.le.s32.totalorder 2, %s15
      // Predicated region
      $region41: #{tpu_custom_call.1} parent=5 // pred_check
        %p282 = pneg %p281
      $region42: #{tpu_custom_call.1} parent=5 // pred_check_branch
        %284 = sbr.rel (%p282) target = $region44
      $region43: #{tpu_custom_call.1} parent=5 // pred_region
        %s285 = ssub.s32 %s15, 2
        // Predicated region
        $region45: #{tpu_custom_call.1} parent=43 // pred_check
          %p286 = pneg %p112
        $region46: #{tpu_custom_call.1} parent=43 // pred_check_branch
          %288 = sbr.rel (%p286) target = $region48
        $region47: #{tpu_custom_call.1} parent=43 // pred_region
          %s289 = sand.u32 %s97, 1
          %s290 = scalar_lea.sflag [#allocation4], %s289
          %s291 = sand.u32 %s97, 1
          %s292 = smul.addr %s291, 4
          %s293 = scalar_lea.vmem [#allocation5], %s292
          %295 = dma.done %s290, 64
        $region48: #{tpu_custom_call.1} parent=43 // pred_fallthru
          _
      $region44: #{tpu_custom_call.1} parent=5 // pred_fallthru
        _
    $region6: #{tpu_custom_call.1} parent=1 // loop_footer
      %s19 = sadd.s32 1, %s15
    $region7: #{tpu_custom_call.1} parent=1 // loop_footer_branch
      %14 = sbr.rel target = $region3
    $region8: #{tpu_custom_call.1} parent=1 // loop_exit
      _
    %296 = vsyncpa [#allocation3], 1
    %s297 = scalar_lea.sflag [#allocation3], 1
    %298 = vsyncpa %s297, 1
    %299 = vsyncpa [#allocation4], 1
    %s300 = scalar_lea.sflag [#allocation4], 1
    %301 = vsyncpa %s300, 1

</llo_original>
